<compile_context>
chip_gen: v7x
topology: tpu7x:2x2x1
jax: 0.10.0
libtpu: 0.0.40
codegen_flags: <defaults>
</compile_context>

<pallas_src>
import functools

import jax
import jax.numpy as jnp
from jax.experimental import pallas as pl
from jax.experimental.pallas import tpu as pltpu

_G = 16      # samples packed per reshaped row: (B, 8) -> (B/16, 128), zero-copy in row-major
_IN = 8
_HID = 16
_OUT = 4


def _round_up(x: int, m: int) -> int:
    return ((x + m - 1) // m) * m


def _mlp_kernel(x_ref, w1_ref, b1_ref, w2_ref, b2_ref, o_ref):
    # x_ref : (BR, 128)  = 16 samples x 8 features per row
    # w1_ref: (128, 256) = kron(I16, W1^T)        b1_ref: (1, 256) = tile(b1, 16)
    # w2_ref: (256, 64)  = kron(I16, W2^T)        b2_ref: (1, 64)  = tile(b2, 16)
    # o_ref : (BR, 64)   = 16 samples x 4 outputs per row
    h = jnp.dot(x_ref[...], w1_ref[...], preferred_element_type=jnp.float32)
    h = jnp.tanh(h + b1_ref[...])                                   # EUP tanh, VPU add
    o = jnp.dot(h, w2_ref[...], preferred_element_type=jnp.float32) + b2_ref[...]
    o_ref[...] = o.astype(o_ref.dtype)


@functools.partial(jax.jit, static_argnames=("block_rows", "x_buffers"))
def mlp_forward(x, w1, b1, w2, b2, *, block_rows: int | None = None, x_buffers: int = 2):
    """x: (B, 8) f32; w1: (16, 8); b1: (16,); w2: (4, 16); b2: (4,) (PyTorch layout).

    Returns (B, 4) f32, matching `fc_2(tanh(fc_1(x)))`.
    """
    B, in_f = x.shape
    assert in_f == _IN, f"expected {_IN} input features, got {in_f}"

    x = x.astype(jnp.float32)

    # Pad only to a multiple of 16 (needed for the zero-copy reshape); common batch sizes
    # need no pad at all. Ragged last grid blocks are handled by Pallas masking.
    B_pad = _round_up(max(B, 1), _G)
    if B_pad != B:
        x = jnp.pad(x, ((0, B_pad - B), (0, 0)))
    n_rows = B_pad // _G
    x_r = x.reshape(n_rows, _G * _IN)            # (B/16, 128): bitcast-style reshape, no copy

    # Block-diagonal weights + tiled biases (tiny: <= 128 KiB each), built once per call.
    eye = jnp.eye(_G, dtype=jnp.float32)
    w1k = jnp.kron(eye, w1.astype(jnp.float32).T)                   # (128, 256)
    w2k = jnp.kron(eye, w2.astype(jnp.float32).T)                   # (256, 64)
    b1t = jnp.tile(b1.astype(jnp.float32), _G).reshape(1, _G * _HID)  # (1, 256)
    b2t = jnp.tile(b2.astype(jnp.float32), _G).reshape(1, _G * _OUT)  # (1, 64)

    # Tile selection: ~65536 samples (4096 rows) per step by default, capped so large B
    # still yields >= 4 grid steps (>= 2 per TensorCore under megacore sharding).
    if block_rows is None:
        block_rows = 4096
        block_rows = min(block_rows, max(512, _round_up(pl.cdiv(n_rows, 4), 8)))
    block_rows = max(8, _round_up(int(block_rows), 8))
    block_rows = min(block_rows, _round_up(n_rows, 8))
    grid = (pl.cdiv(n_rows, block_rows),)

    # Scoped-VMEM budget: x tiles (multi-buffered) + out tiles (64 lanes pad to 128 in VMEM)
    # + the (BR, 256) f32 hidden intermediate + weights/slack. Raise past the 16/32 MiB
    # scoped defaults; stay under the 64 MiB v7x physical VMEM.
    nb = max(2, int(x_buffers))
    per_row = 4 * (_G * _IN) * nb + 4 * 128 * 2 + 4 * (_G * _HID) * 2
    est_vmem = block_rows * per_row + (2 << 20)
    vmem_limit = int(min(64 * 1024 * 1024, max(32 * 1024 * 1024, (3 * est_vmem) // 2)))

    # Streamed input spec (optionally deeper-buffered); weights/biases are VMEM-resident
    # via constant index maps, so extra buffering there would be pointless.
    if int(x_buffers) > 2:
        x_spec = pl.BlockSpec((block_rows, _G * _IN), lambda i: (i, 0),
                              pipeline_mode=pl.Buffered(int(x_buffers)))
    else:
        x_spec = pl.BlockSpec((block_rows, _G * _IN), lambda i: (i, 0))

    weight_bytes = (_G * _IN * _G * _HID + _G * _HID * _G * _OUT + _G * _HID + _G * _OUT) * 4
    cost = pl.CostEstimate(
        flops=2 * n_rows * (_G * _IN * _G * _HID + _G * _HID * _G * _OUT),
        transcendentals=n_rows * _G * _HID,
        bytes_accessed=n_rows * (_G * _IN + _G * _OUT) * 4 + weight_bytes,
    )

    out_r = pl.pallas_call(
        _mlp_kernel,
        out_shape=jax.ShapeDtypeStruct((n_rows, _G * _OUT), jnp.float32),
        grid=grid,
        in_specs=[
            x_spec,
            pl.BlockSpec((_G * _IN, _G * _HID), lambda i: (0, 0)),
            pl.BlockSpec((1, _G * _HID), lambda i: (0, 0)),
            pl.BlockSpec((_G * _HID, _G * _OUT), lambda i: (0, 0)),
            pl.BlockSpec((1, _G * _OUT), lambda i: (0, 0)),
        ],
        out_specs=pl.BlockSpec((block_rows, _G * _OUT), lambda i: (i, 0)),
        compiler_params=pltpu.CompilerParams(
            dimension_semantics=("parallel",),
            vmem_limit_bytes=vmem_limit,
        ),
        cost_estimate=cost,
    )(x_r, w1k, b1t, w2k, b2t)

    out = out_r.reshape(B_pad, _OUT)             # zero-copy reshape back to (B_pad, 4)
    if B_pad != B:
        out = out[:B]
    return out


if __name__ == "__main__":
    key = jax.random.PRNGKey(0)
    kx, k1, k2, k3, k4, kx2, kx3 = jax.random.split(key, 7)

    # Deterministic parameter init (uniform ~ PyTorch Linear default bounds).
    bound1 = 1.0 / jnp.sqrt(8.0)
    w1 = jax.random.uniform(k1, (16, 8), minval=-bound1, maxval=bound1, dtype=jnp.float32)
    b1 = jax.random.uniform(k2, (16,), minval=-bound1, maxval=bound1, dtype=jnp.float32)
    bound2 = 1.0 / jnp.sqrt(16.0)
    w2 = jax.random.uniform(k3, (4, 16), minval=-bound2, maxval=bound2, dtype=jnp.float32)
    b2 = jax.random.uniform(k4, (4,), minval=-bound2, maxval=bound2, dtype=jnp.float32)

    def reference(x):
        h1 = jnp.tanh(jnp.dot(x, w1.T, precision=jax.lax.Precision.HIGHEST) + b1)
        return jnp.dot(h1, w2.T, precision=jax.lax.Precision.HIGHEST) + b2

    # 1) Small batch (pads 8 -> 16 samples, single ragged block).
    B = 8
    x = jax.random.normal(kx, (B, 8), dtype=jnp.float32)
    out = jax.block_until_ready(mlp_forward(x, w1, b1, w2, b2))
    assert out.shape == (B, 4)
    assert jnp.allclose(out, reference(x), atol=1e-4, rtol=1e-4), "mismatch (B=8)"

    # 2) Multiple of 16 (no padding), multi-step pipelined grid (grid=4, even blocks).
    B2 = 1024
    x2 = jax.random.normal(kx2, (B2, 8), dtype=jnp.float32)
    out2 = jax.block_until_ready(mlp_forward(x2, w1, b1, w2, b2, block_rows=16))
    assert out2.shape == (B2, 4)
    assert jnp.allclose(out2, reference(x2), atol=1e-4, rtol=1e-4), "mismatch (B=1024)"

    # 3) Ragged batch (pad 300 -> 304) + ragged last grid block (19 rows, block of 8).
    B3 = 300
    x3 = jax.random.normal(kx3, (B3, 8), dtype=jnp.float32)
    out3 = jax.block_until_ready(mlp_forward(x3, w1, b1, w2, b2, block_rows=8))
    assert out3.shape == (B3, 4)
    assert jnp.allclose(out3, reference(x3), atol=1e-4, rtol=1e-4), "mismatch (B=300)"

    print("KERNEL_OK")
</pallas_src>

<mosaic_0001>
module attributes {stable_mosaic.version = 11 : i64} {
  func.func @_mlp_kernel(%arg0: i32, %arg1: memref<8x128xf32, #tpu.memory_space<vmem>>, %arg2: memref<128x256xf32, #tpu.memory_space<vmem>>, %arg3: memref<1x256xf32, #tpu.memory_space<vmem>>, %arg4: memref<256x64xf32, #tpu.memory_space<vmem>>, %arg5: memref<1x64xf32, #tpu.memory_space<vmem>>, %arg6: memref<8x64xf32, #tpu.memory_space<vmem>>) attributes {dimension_semantics = [#tpu.dimension_semantics<parallel>], iteration_bounds = array<i64: 1>, scalar_prefetch = 0 : i64, scratch_operands = 0 : i64, tpu.core_type = #tpu.core_type<tc>, window_params = [{transform_indices = @transform_0, window_bounds = array<i64: 8, 128>}, {pipeline_mode = #tpu.pipeline_mode<synchronous>, transform_indices = @transform_1, window_bounds = array<i64: 128, 256>}, {pipeline_mode = #tpu.pipeline_mode<synchronous>, transform_indices = @transform_2, window_bounds = array<i64: 1, 256>}, {pipeline_mode = #tpu.pipeline_mode<synchronous>, transform_indices = @transform_3, window_bounds = array<i64: 256, 64>}, {pipeline_mode = #tpu.pipeline_mode<synchronous>, transform_indices = @transform_4, window_bounds = array<i64: 1, 64>}, {transform_indices = @transform_5, window_bounds = array<i64: 8, 64>}]} {
    %c0 = arith.constant 0 : index
    %c0_0 = arith.constant 0 : index
    %0 = vector.load %arg1[%c0, %c0_0] : memref<8x128xf32, #tpu.memory_space<vmem>>, vector<8x128xf32>
    %c0_1 = arith.constant 0 : index
    %c0_2 = arith.constant 0 : index
    %1 = vector.load %arg2[%c0_1, %c0_2] : memref<128x256xf32, #tpu.memory_space<vmem>>, vector<128x256xf32>
    %cst = arith.constant dense<0.000000e+00> : vector<8x256xf32>
    %2 = tpu.matmul %0, %1, %cst {dimension_numbers = #tpu.dot_dimension_numbers<[1], [0], [0], [1], [0, 0, 1, 1], [], []>} : vector<8x128xf32>, vector<128x256xf32>, vector<8x256xf32> -> vector<8x256xf32>
    %c0_3 = arith.constant 0 : index
    %c0_4 = arith.constant 0 : index
    %3 = vector.load %arg3[%c0_3, %c0_4] : memref<1x256xf32, #tpu.memory_space<vmem>>, vector<1x256xf32>
    %4 = vector.broadcast %3 : vector<1x256xf32> to vector<8x256xf32>
    %5 = arith.addf %2, %4 : vector<8x256xf32>
    %6 = math.tanh %5 : vector<8x256xf32>
    %c0_5 = arith.constant 0 : index
    %c0_6 = arith.constant 0 : index
    %7 = vector.load %arg4[%c0_5, %c0_6] : memref<256x64xf32, #tpu.memory_space<vmem>>, vector<256x64xf32>
    %cst_7 = arith.constant dense<0.000000e+00> : vector<8x64xf32>
    %8 = tpu.matmul %6, %7, %cst_7 {dimension_numbers = #tpu.dot_dimension_numbers<[1], [0], [0], [1], [0, 0, 1, 1], [], []>} : vector<8x256xf32>, vector<256x64xf32>, vector<8x64xf32> -> vector<8x64xf32>
    %c0_8 = arith.constant 0 : index
    %c0_9 = arith.constant 0 : index
    %9 = vector.load %arg5[%c0_8, %c0_9] : memref<1x64xf32, #tpu.memory_space<vmem>>, vector<1x64xf32>
    %10 = vector.broadcast %9 : vector<1x64xf32> to vector<8x64xf32>
    %11 = arith.addf %8, %10 : vector<8x64xf32>
    %c0_10 = arith.constant 0 : index
    %c0_11 = arith.constant 0 : index
    %12 = vector.load %arg6[%c0_10, %c0_11] : memref<8x64xf32, #tpu.memory_space<vmem>>, vector<8x64xf32>
    tpu.vector_store %arg6[%c0_10, %c0_11], %11 {strides = array<i32>} : memref<8x64xf32, #tpu.memory_space<vmem>>, vector<8x64xf32>,
    return
  }
  func.func @transform_0(%arg0: i32) -> (i32, i32) {
    %c0_i32 = arith.constant 0 : i32
    %c0_i32_0 = arith.constant 0 : i32
    return %arg0, %c0_i32 : i32, i32
  }
  func.func @transform_1(%arg0: i32) -> (i32, i32) {
    %c0_i32 = arith.constant 0 : i32
    %c0_i32_0 = arith.constant 0 : i32
    %c0_i32_1 = arith.constant 0 : i32
    return %c0_i32, %c0_i32_0 : i32, i32
  }
  func.func @transform_2(%arg0: i32) -> (i32, i32) {
    %c0_i32 = arith.constant 0 : i32
    %c0_i32_0 = arith.constant 0 : i32
    %c0_i32_1 = arith.constant 0 : i32
    return %c0_i32, %c0_i32_0 : i32, i32
  }
  func.func @transform_3(%arg0: i32) -> (i32, i32) {
    %c0_i32 = arith.constant 0 : i32
    %c0_i32_0 = arith.constant 0 : i32
    %c0_i32_1 = arith.constant 0 : i32
    return %c0_i32, %c0_i32_0 : i32, i32
  }
  func.func @transform_4(%arg0: i32) -> (i32, i32) {
    %c0_i32 = arith.constant 0 : i32
    %c0_i32_0 = arith.constant 0 : i32
    %c0_i32_1 = arith.constant 0 : i32
    return %c0_i32, %c0_i32_0 : i32, i32
  }
  func.func @transform_5(%arg0: i32) -> (i32, i32) {
    %c0_i32 = arith.constant 0 : i32
    %c0_i32_0 = arith.constant 0 : i32
    return %arg0, %c0_i32 : i32, i32
  }
}

</mosaic_0001>

<llo_original>
// kernel: tile.13
$region0: #{tile.13}
  #allocation0 [shape = 's32[1]{0}', space=sflag, size = 0x4, scoped, tag = 'scoped memory for tile.13']
  %s0 = inlined_call_operand.vmem [shape: f32[16], index: 0, kind: input, shape index: {}]
  %s1 = inlined_call_operand.vmem [shape: f32[16,16], index: 1, kind: output, shape index: {}]
  // Predicated region
  $region2: #{tile.13} parent=0 // pred_check
    _
  $region3: #{tile.13} parent=0 // pred_check_branch
    %3 = sbr.rel (0) target = $region5
  $region4: #{tile.13} parent=0 // pred_region
    _
  $region5: #{tile.13} parent=0 // pred_fallthru
    _
  %v4 = vld [vmem:[%s0] ss:$0 sm:$0xff]
  %5 = vst [vmem:[%s1] sm:$0xff] %v4
  %s6 = scalar_lea.vmem %s1, 8
  %7 = vst [vmem:[%s6] sm:$0xff] %v4

// kernel: tile.14
$region0: #{tile.14}
  %s0 = inlined_call_operand.vmem [shape: f32[16,16], index: 0, kind: input, shape index: {}]
  %s1 = inlined_call_operand.vmem [shape: f32[1,256], index: 1, kind: output, shape index: {}]
  $region1: #{tile.14} parent=0
    #allocation0 [shape = 'u8[8192]{0}', space=vmem, size = 0x2000, scoped, tag = 'scoped mem for output reshape']
    %s2 = smov 3
    %v3 = vld [vmem:[%s0] ss:$8 sm:%s2]
    %vm4 = vcmask 130048
    %5 = vst.msk [vmem:[#allocation0] ss:$8 sm:$0x3] %vm4, %v3
    %s6 = scalar_lea.vmem %s0, 7
    %s7 = smov 3
    %v8 = vld [vmem:[%s6] ss:$8 sm:%s7]
    %9 = vrot.lane.b32.xlu0 %v8, 112
    %v10 = vpop.permute.xlu0 %9
    %vm11 = vcmask 1048448
    %12 = vst.msk [vmem:[#allocation0] ss:$8 sm:$0x3] %vm11, %v10
    %s13 = scalar_lea.vmem %s0, 6
    %s14 = smov 3
    %v15 = vld [vmem:[%s13] ss:$8 sm:%s14]
    %16 = vrot.lane.b32.xlu0 %v15, 96
    %v17 = vpop.permute.xlu0 %16
    %vm18 = vcmask 917248
    %19 = vst.msk [vmem:[#allocation0] ss:$8 sm:$0x3] %vm18, %v17
    %s20 = scalar_lea.vmem %s0, 5
    %s21 = smov 3
    %v22 = vld [vmem:[%s20] ss:$8 sm:%s21]
    %23 = vrot.lane.b32.xlu0 %v22, 80
    %v24 = vpop.permute.xlu0 %23
    %vm25 = vcmask 786048
    %26 = vst.msk [vmem:[#allocation0] ss:$8 sm:$0x3] %vm25, %v24
    %s27 = scalar_lea.vmem %s0, 4
    %s28 = smov 3
    %v29 = vld [vmem:[%s27] ss:$8 sm:%s28]
    %30 = vrot.lane.b32.xlu0 %v29, 64
    %v31 = vpop.permute.xlu0 %30
    %vm32 = vcmask 654848
    %33 = vst.msk [vmem:[#allocation0] ss:$8 sm:$0x3] %vm32, %v31
    %s34 = scalar_lea.vmem %s0, 3
    %s35 = smov 3
    %v36 = vld [vmem:[%s34] ss:$8 sm:%s35]
    %37 = vrot.lane.b32.xlu0 %v36, 48
    %v38 = vpop.permute.xlu0 %37
    %vm39 = vcmask 523648
    %40 = vst.msk [vmem:[#allocation0] ss:$8 sm:$0x3] %vm39, %v38
    %s41 = scalar_lea.vmem %s0, 2
    %s42 = smov 3
    %v43 = vld [vmem:[%s41] ss:$8 sm:%s42]
    %44 = vrot.lane.b32.xlu0 %v43, 32
    %v45 = vpop.permute.xlu0 %44
    %vm46 = vcmask 392448
    %47 = vst.msk [vmem:[#allocation0] ss:$8 sm:$0x3] %vm46, %v45
    %s48 = scalar_lea.vmem %s0, 1
    %s49 = smov 3
    %v50 = vld [vmem:[%s48] ss:$8 sm:%s49]
    %51 = vrot.lane.b32.xlu0 %v50, 16
    %v52 = vpop.permute.xlu0 %51
    %vm53 = vcmask 261248
    %54 = vst.msk [vmem:[#allocation0] ss:$8 sm:$0x3] %vm53, %v52
    %s56 = sshllo.u32 0, 1
    %v58 = vld [vmem:[#allocation0] sm:%s56]
    %s59 = sshllo.u32 0, 1
    %60 = vst [vmem:[%s1] sm:%s59] %v58
    %s61 = scalar_lea.vmem [#allocation0], 8
    %v62 = vld [vmem:[%s61] sm:%s56]
    %s63 = sshllo.u32 0, 1
    %s64 = scalar_lea.vmem %s1, 1
    %65 = vst [vmem:[%s64] sm:%s63] %v62

// kernel: tile.18
$region0: #{tile.18}
  #allocation0 [shape = 's32[1]{0}', space=sflag, size = 0x4, scoped, tag = 'scoped memory for tile.18']
  %s0 = inlined_call_operand.vmem [shape: f32[4], index: 0, kind: input, shape index: {}]
  %s1 = inlined_call_operand.vmem [shape: f32[16,4], index: 1, kind: output, shape index: {}]
  // Predicated region
  $region2: #{tile.18} parent=0 // pred_check
    _
  $region3: #{tile.18} parent=0 // pred_check_branch
    %3 = sbr.rel (0) target = $region5
  $region4: #{tile.18} parent=0 // pred_region
    _
  $region5: #{tile.18} parent=0 // pred_fallthru
    _
  %v4 = vld [vmem:[%s0] ss:$0 sm:$0xff]
  %5 = vst [vmem:[%s1] sm:$0xff] %v4
  %s6 = scalar_lea.vmem %s1, 8
  %7 = vst [vmem:[%s6] sm:$0xff] %v4

// kernel: tile.19
$region0: #{tile.19}
  %s0 = inlined_call_operand.vmem [shape: f32[16,4], index: 0, kind: input, shape index: {}]
  %s1 = inlined_call_operand.vmem [shape: f32[1,64], index: 1, kind: output, shape index: {}]
  $region1: #{tile.19} parent=0
    #allocation0 [shape = 'u8[4096]{0}', space=vmem, size = 0x1000, scoped, tag = 'scoped mem for output reshape']
    %v2 = vld [vmem:[%s0] sm:$0x1]
    %vm3 = vcmask 31744
    %4 = vst.msk [vmem:[#allocation0] sm:$0x1] %vm3, %v2
    %s5 = scalar_lea.vmem %s0, 15
    %v6 = vld [vmem:[%s5] sm:$0x1]
    %7 = vrot.lane.b32.xlu0 %v6, 60
    %v8 = vpop.permute.xlu0 %7
    %vm9 = vcmask 523744
    %10 = vst.msk [vmem:[#allocation0] sm:$0x1] %vm9, %v8
    %s11 = scalar_lea.vmem %s0, 14
    %v12 = vld [vmem:[%s11] sm:$0x1]
    %13 = vrot.lane.b32.xlu0 %v12, 56
    %v14 = vpop.permute.xlu0 %13
    %vm15 = vcmask 490944
    %16 = vst.msk [vmem:[#allocation0] sm:$0x1] %vm15, %v14
    %s17 = scalar_lea.vmem %s0, 13
    %v18 = vld [vmem:[%s17] sm:$0x1]
    %19 = vrot.lane.b32.xlu0 %v18, 52
    %v20 = vpop.permute.xlu0 %19
    %vm21 = vcmask 458144
    %22 = vst.msk [vmem:[#allocation0] sm:$0x1] %vm21, %v20
    %s23 = scalar_lea.vmem %s0, 12
    %v24 = vld [vmem:[%s23] sm:$0x1]
    %25 = vrot.lane.b32.xlu0 %v24, 48
    %v26 = vpop.permute.xlu0 %25
    %vm27 = vcmask 425344
    %28 = vst.msk [vmem:[#allocation0] sm:$0x1] %vm27, %v26
    %s29 = scalar_lea.vmem %s0, 11
    %v30 = vld [vmem:[%s29] sm:$0x1]
    %31 = vrot.lane.b32.xlu0 %v30, 44
    %v32 = vpop.permute.xlu0 %31
    %vm33 = vcmask 392544
    %34 = vst.msk [vmem:[#allocation0] sm:$0x1] %vm33, %v32
    %s35 = scalar_lea.vmem %s0, 10
    %v36 = vld [vmem:[%s35] sm:$0x1]
    %37 = vrot.lane.b32.xlu0 %v36, 40
    %v38 = vpop.permute.xlu0 %37
    %vm39 = vcmask 359744
    %40 = vst.msk [vmem:[#allocation0] sm:$0x1] %vm39, %v38
    %s41 = scalar_lea.vmem %s0, 9
    %v42 = vld [vmem:[%s41] sm:$0x1]
    %43 = vrot.lane.b32.xlu0 %v42, 36
    %v44 = vpop.permute.xlu0 %43
    %vm45 = vcmask 326944
    %46 = vst.msk [vmem:[#allocation0] sm:$0x1] %vm45, %v44
    %s47 = scalar_lea.vmem %s0, 8
    %v48 = vld [vmem:[%s47] sm:$0x1]
    %49 = vrot.lane.b32.xlu0 %v48, 32
    %v50 = vpop.permute.xlu0 %49
    %vm51 = vcmask 294144
    %52 = vst.msk [vmem:[#allocation0] sm:$0x1] %vm51, %v50
    %s53 = scalar_lea.vmem %s0, 7
    %v54 = vld [vmem:[%s53] sm:$0x1]
    %55 = vrot.lane.b32.xlu0 %v54, 28
    %v56 = vpop.permute.xlu0 %55
    %vm57 = vcmask 261344
    %58 = vst.msk [vmem:[#allocation0] sm:$0x1] %vm57, %v56
    %s59 = scalar_lea.vmem %s0, 6
    %v60 = vld [vmem:[%s59] sm:$0x1]
    %61 = vrot.lane.b32.xlu0 %v60, 24
    %v62 = vpop.permute.xlu0 %61
    %vm63 = vcmask 228544
    %64 = vst.msk [vmem:[#allocation0] sm:$0x1] %vm63, %v62
    %s65 = scalar_lea.vmem %s0, 5
    %v66 = vld [vmem:[%s65] sm:$0x1]
    %67 = vrot.lane.b32.xlu0 %v66, 20
    %v68 = vpop.permute.xlu0 %67
    %vm69 = vcmask 195744
    %70 = vst.msk [vmem:[#allocation0] sm:$0x1] %vm69, %v68
    %s71 = scalar_lea.vmem %s0, 4
    %v72 = vld [vmem:[%s71] sm:$0x1]
    %73 = vrot.lane.b32.xlu0 %v72, 16
    %v74 = vpop.permute.xlu0 %73
    %vm75 = vcmask 162944
    %76 = vst.msk [vmem:[#allocation0] sm:$0x1] %vm75, %v74
    %s77 = scalar_lea.vmem %s0, 3
    %v78 = vld [vmem:[%s77] sm:$0x1]
    %79 = vrot.lane.b32.xlu0 %v78, 12
    %v80 = vpop.permute.xlu0 %79
    %vm81 = vcmask 130144
    %82 = vst.msk [vmem:[#allocation0] sm:$0x1] %vm81, %v80
    %s83 = scalar_lea.vmem %s0, 2
    %v84 = vld [vmem:[%s83] sm:$0x1]
    %85 = vrot.lane.b32.xlu0 %v84, 8
    %v86 = vpop.permute.xlu0 %85
    %vm87 = vcmask 97344
    %88 = vst.msk [vmem:[#allocation0] sm:$0x1] %vm87, %v86
    %s89 = scalar_lea.vmem %s0, 1
    %v90 = vld [vmem:[%s89] sm:$0x1]
    %91 = vrot.lane.b32.xlu0 %v90, 4
    %v92 = vpop.permute.xlu0 %91
    %vm93 = vcmask 64544
    %94 = vst.msk [vmem:[#allocation0] sm:$0x1] %vm93, %v92
    %s96 = sshllo.u32 0, 1
    %v98 = vld [vmem:[#allocation0] sm:%s96]
    %s99 = sshllo.u32 0, 1
    %100 = vst [vmem:[%s1] sm:%s99] %v98

// kernel: mlp_forward.1
$region0: #{mlp_forward.1}
  #allocation0 [shape = 'u32[]', space=smem, size = 0x4, offset = 0x4, fixed_abs, tag = 'smem constant byte address 0x4 - core index']
  #allocation1 [shape = 'u32[144,128]{1,0:T(1,128)}', space=vmem, size = 0x12000, scoped, tag = 'internal scratch']
  %s0 = inlined_call_operand.vmem [shape: f32[1,128], index: 0, kind: input, shape index: {}]
  %s1 = inlined_call_operand.vmem [shape: f32[128,256], index: 1, kind: input, shape index: {}]
  %s2 = inlined_call_operand.vmem [shape: f32[1,256], index: 2, kind: input, shape index: {}]
  %s3 = inlined_call_operand.vmem [shape: f32[256,64], index: 3, kind: input, shape index: {}]
  %s4 = inlined_call_operand.vmem [shape: f32[1,64], index: 4, kind: input, shape index: {}]
  %s5 = inlined_call_operand.vmem [shape: f32[1,64], index: 5, kind: output, shape index: {}]
  %s6 = sld [smem:[#allocation0]]
  $region60: #{mlp_forward.1} parent=0
    _
  %s8 = ssub.s32 1, %s6
  %s9 = scalar_select 0, %s8, %s6
  $region1: #{mlp_forward.1} parent=0
    #allocation2 [shape = 'u8[4096]{0}', space=vmem, size = 0x1000, scoped, tag = 'output window, operand 0, single buffered']
    // Predicated region
    $region2: #{mlp_forward.1} parent=1 // pred_check
      _
    $region3: #{mlp_forward.1} parent=1 // pred_check_branch
      %11 = sbr.rel (0) target = $region5
    $region4: #{mlp_forward.1} parent=1 // pred_region
      _
    $region5: #{mlp_forward.1} parent=1 // pred_fallthru
      _
    // Predicated region
    $region6: #{mlp_forward.1} parent=1 // pred_check
      _
    $region7: #{mlp_forward.1} parent=1 // pred_check_branch
      %13 = sbr.rel (0) target = $region9
    $region8: #{mlp_forward.1} parent=1 // pred_region
      _
    $region9: #{mlp_forward.1} parent=1 // pred_fallthru
      _
    // Predicated region
    $region10: #{mlp_forward.1} parent=1 // pred_check
      _
    $region11: #{mlp_forward.1} parent=1 // pred_check_branch
      %15 = sbr.rel (0) target = $region13
    $region12: #{mlp_forward.1} parent=1 // pred_region
      _
    $region13: #{mlp_forward.1} parent=1 // pred_fallthru
      _
    // Predicated region
    $region14: #{mlp_forward.1} parent=1 // pred_check
      _
    $region15: #{mlp_forward.1} parent=1 // pred_check_branch
      %17 = sbr.rel (0) target = $region17
    $region16: #{mlp_forward.1} parent=1 // pred_region
      _
    $region17: #{mlp_forward.1} parent=1 // pred_fallthru
      _
    // Predicated region
    $region18: #{mlp_forward.1} parent=1 // pred_check
      _
    $region19: #{mlp_forward.1} parent=1 // pred_check_branch
      %19 = sbr.rel (0) target = $region21
    $region20: #{mlp_forward.1} parent=1 // pred_region
      _
    $region21: #{mlp_forward.1} parent=1 // pred_fallthru
      _
    %v20 = vld [vmem:[%s0] sm:$0xff]
    %v21 = vld [vmem:[%s1] sm:$0xff]
    %v22 = vld [vmem:[%s1 + $0x8] sm:$0xff]
    %v23 = vld [vmem:[%s1 + $0x10] sm:$0xff]
    %v24 = vld [vmem:[%s1 + $0x18] sm:$0xff]
    %v25 = vld [vmem:[%s1 + $0x20] sm:$0xff]
    %v26 = vld [vmem:[%s1 + $0x28] sm:$0xff]
    %v27 = vld [vmem:[%s1 + $0x30] sm:$0xff]
    %v28 = vld [vmem:[%s1 + $0x38] sm:$0xff]
    %v29 = vld [vmem:[%s1 + $0x40] sm:$0xff]
    %v30 = vld [vmem:[%s1 + $0x48] sm:$0xff]
    %v31 = vld [vmem:[%s1 + $0x50] sm:$0xff]
    %v32 = vld [vmem:[%s1 + $0x58] sm:$0xff]
    %v33 = vld [vmem:[%s1 + $0x60] sm:$0xff]
    %v34 = vld [vmem:[%s1 + $0x68] sm:$0xff]
    %v35 = vld [vmem:[%s1 + $0x70] sm:$0xff]
    %v36 = vld [vmem:[%s1 + $0x78] sm:$0xff]
    %v37 = vld [vmem:[%s1 + $0x80] sm:$0xff]
    %v38 = vld [vmem:[%s1 + $0x88] sm:$0xff]
    %v39 = vld [vmem:[%s1 + $0x90] sm:$0xff]
    %v40 = vld [vmem:[%s1 + $0x98] sm:$0xff]
    %v41 = vld [vmem:[%s1 + $0xa0] sm:$0xff]
    %v42 = vld [vmem:[%s1 + $0xa8] sm:$0xff]
    %v43 = vld [vmem:[%s1 + $0xb0] sm:$0xff]
    %v44 = vld [vmem:[%s1 + $0xb8] sm:$0xff]
    %v45 = vld [vmem:[%s1 + $0xc0] sm:$0xff]
    %v46 = vld [vmem:[%s1 + $0xc8] sm:$0xff]
    %v47 = vld [vmem:[%s1 + $0xd0] sm:$0xff]
    %v48 = vld [vmem:[%s1 + $0xd8] sm:$0xff]
    %v49 = vld [vmem:[%s1 + $0xe0] sm:$0xff]
    %v50 = vld [vmem:[%s1 + $0xe8] sm:$0xff]
    %v51 = vld [vmem:[%s1 + $0xf0] sm:$0xff]
    %v52 = vld [vmem:[%s1 + $0xf8] sm:$0xff]
    %v53 = vld [vmem:[%s2] sm:$0x3]
    %v55 = vlaneseq
    %v56 = vshrl.u32 %v55, 7
    %v57 = vsub.s32 0, %v56
    %v58 = vrot.slane %v53, %v57
    %v59 = vlaneseq
    %v60 = vshrl.u32 %v59, 7
    %v61 = vsub.s32 1, %v60
    %v62 = vrot.slane %v53, %v61
    %65 = vmatprep.subr.mxu0 %v22
    %66 = vmatpush1.msra.mxu0 %v21
    %67 = vmatprep.subr.mxu0 %v24
    %68 = vmatpush1.msra.mxu0 %v23
    %69 = vmatprep.subr.mxu0 %v26
    %70 = vmatpush1.msra.mxu0 %v25
    %71 = vmatprep.subr.mxu0 %v28
    %72 = vmatpush1.msra.mxu0 %v27
    %73 = vmatprep.subr.mxu0 %v30
    %74 = vmatpush1.msra.mxu0 %v29
    %75 = vmatprep.subr.mxu0 %v32
    %76 = vmatpush1.msra.mxu0 %v31
    %77 = vmatprep.subr.mxu0 %v34
    %78 = vmatpush1.msra.mxu0 %v33
    %79 = vmatprep.subr.mxu0 %v36
    %80 = vmatpush1.msra.mxu0 %v35
    %81 = vmatprep.subr.mxu0 %v38
    %82 = vmatpush1.msra.mxu0 %v37
    %83 = vmatprep.subr.mxu0 %v40
    %84 = vmatpush1.msra.mxu0 %v39
    %85 = vmatprep.subr.mxu0 %v42
    %86 = vmatpush1.msra.mxu0 %v41
    %87 = vmatprep.subr.mxu0 %v44
    %88 = vmatpush1.msra.mxu0 %v43
    %89 = vmatprep.subr.mxu0 %v46
    %90 = vmatpush1.msra.mxu0 %v45
    %91 = vmatprep.subr.mxu0 %v48
    %92 = vmatpush1.msra.mxu0 %v47
    %93 = vmatprep.subr.mxu0 %v50
    %94 = vmatpush1.msra.mxu0 %v49
    %95 = vmatprep.subr.mxu0 %v52
    %96 = vmatpush1.msra.mxu0 %v51
    %97 = vmatprep.subr.mxu0 0.0
    %98 = vmatpush1.msra.mxu0 0.0
    %99 = vmatprep.subr.mxu0 0.0
    %100 = vmatpush1.msra.mxu0 0.0
    %101 = vmatprep.subr.mxu0 0.0
    %102 = vmatpush1.msra.mxu0 0.0
    %103 = vmatprep.subr.mxu0 0.0
    %104 = vmatpush1.msra.mxu0 0.0
    %105 = vmatprep.subr.mxu0 0.0
    %106 = vmatpush1.msra.mxu0 0.0
    %107 = vmatprep.subr.mxu0 0.0
    %108 = vmatpush1.msra.mxu0 0.0
    %109 = vmatprep.subr.mxu0 0.0
    %110 = vmatpush1.msra.mxu0 0.0
    %111 = vmatprep.subr.mxu0 0.0
    %112 = vmatpush1.msra.mxu0 0.0
    %113 = vmatprep.subr.mxu0 0.0
    %114 = vmatpush1.msra.mxu0 0.0
    %115 = vmatprep.subr.mxu0 0.0
    %116 = vmatpush1.msra.mxu0 0.0
    %117 = vmatprep.subr.mxu0 0.0
    %118 = vmatpush1.msra.mxu0 0.0
    %119 = vmatprep.subr.mxu0 0.0
    %120 = vmatpush1.msra.mxu0 0.0
    %121 = vmatprep.subr.mxu0 0.0
    %122 = vmatpush1.msra.mxu0 0.0
    %123 = vmatprep.subr.mxu0 0.0
    %124 = vmatpush1.msra.mxu0 0.0
    %125 = vmatprep.subr.mxu0 0.0
    %126 = vmatpush1.msra.mxu0 0.0
    %127 = vmatprep.subr.mxu0 0.0
    %128 = vmatpush1.msra.mxu0 0.0
    %129 = vmatprep.mubr.f32.mxu0 0.0
    %130 = vmatmul.mubr.f32.gmra.mrb[0].mxu0 %v20
    %v131 = vpop.f32.mrb[0].mxu0
    %v132 = vadd.f32 %v58, %v131
    %v133 = vpop.f32.mrb[0].mxu0
    %v134 = vadd.f32 %v62, %v133
    %135 = vdwg.mxu0
    %v136 = vtanh.pop %v132
    %v137 = vtanh.pop %v134
    %v138 = vld [vmem:[%s3] sm:$0xff]
    %v139 = vld [vmem:[%s3 + $0x8] sm:$0xff]
    %v140 = vld [vmem:[%s3 + $0x10] sm:$0xff]
    %v141 = vld [vmem:[%s3 + $0x18] sm:$0xff]
    %v142 = vld [vmem:[%s3 + $0x20] sm:$0xff]
    %v143 = vld [vmem:[%s3 + $0x28] sm:$0xff]
    %v144 = vld [vmem:[%s3 + $0x30] sm:$0xff]
    %v145 = vld [vmem:[%s3 + $0x38] sm:$0xff]
    %v146 = vld [vmem:[%s3 + $0x40] sm:$0xff]
    %v147 = vld [vmem:[%s3 + $0x48] sm:$0xff]
    %v148 = vld [vmem:[%s3 + $0x50] sm:$0xff]
    %v149 = vld [vmem:[%s3 + $0x58] sm:$0xff]
    %v150 = vld [vmem:[%s3 + $0x60] sm:$0xff]
    %v151 = vld [vmem:[%s3 + $0x68] sm:$0xff]
    %v152 = vld [vmem:[%s3 + $0x70] sm:$0xff]
    %v153 = vld [vmem:[%s3 + $0x78] sm:$0xff]
    %v154 = vld [vmem:[%s3 + $0x80] sm:$0xff]
    %v155 = vld [vmem:[%s3 + $0x88] sm:$0xff]
    %v156 = vld [vmem:[%s3 + $0x90] sm:$0xff]
    %v157 = vld [vmem:[%s3 + $0x98] sm:$0xff]
    %v158 = vld [vmem:[%s3 + $0xa0] sm:$0xff]
    %v159 = vld [vmem:[%s3 + $0xa8] sm:$0xff]
    %v160 = vld [vmem:[%s3 + $0xb0] sm:$0xff]
    %v161 = vld [vmem:[%s3 + $0xb8] sm:$0xff]
    %v162 = vld [vmem:[%s3 + $0xc0] sm:$0xff]
    %v163 = vld [vmem:[%s3 + $0xc8] sm:$0xff]
    %v164 = vld [vmem:[%s3 + $0xd0] sm:$0xff]
    %v165 = vld [vmem:[%s3 + $0xd8] sm:$0xff]
    %v166 = vld [vmem:[%s3 + $0xe0] sm:$0xff]
    %v167 = vld [vmem:[%s3 + $0xe8] sm:$0xff]
    %v168 = vld [vmem:[%s3 + $0xf0] sm:$0xff]
    %v169 = vld [vmem:[%s3 + $0xf8] sm:$0xff]
    %v170 = vld [vmem:[%s4] sm:$0x1]
    %v172 = vlaneseq
    %v173 = vshrl.u32 %v172, 7
    %v174 = vsub.s32 0, %v173
    %v175 = vrot.slane %v170, %v174
    %177 = vmatprep.subr.mxu0 0.0
    %178 = vmatpush1.msra.mxu0 %v138
    %179 = vmatprep.subr.mxu0 0.0
    %180 = vmatpush1.msra.mxu0 %v139
    %181 = vmatprep.subr.mxu0 0.0
    %182 = vmatpush1.msra.mxu0 %v140
    %183 = vmatprep.subr.mxu0 0.0
    %184 = vmatpush1.msra.mxu0 %v141
    %185 = vmatprep.subr.mxu0 0.0
    %186 = vmatpush1.msra.mxu0 %v142
    %187 = vmatprep.subr.mxu0 0.0
    %188 = vmatpush1.msra.mxu0 %v143
    %189 = vmatprep.subr.mxu0 0.0
    %190 = vmatpush1.msra.mxu0 %v144
    %191 = vmatprep.subr.mxu0 0.0
    %192 = vmatpush1.msra.mxu0 %v145
    %193 = vmatprep.subr.mxu0 0.0
    %194 = vmatpush1.msra.mxu0 %v146
    %195 = vmatprep.subr.mxu0 0.0
    %196 = vmatpush1.msra.mxu0 %v147
    %197 = vmatprep.subr.mxu0 0.0
    %198 = vmatpush1.msra.mxu0 %v148
    %199 = vmatprep.subr.mxu0 0.0
    %200 = vmatpush1.msra.mxu0 %v149
    %201 = vmatprep.subr.mxu0 0.0
    %202 = vmatpush1.msra.mxu0 %v150
    %203 = vmatprep.subr.mxu0 0.0
    %204 = vmatpush1.msra.mxu0 %v151
    %205 = vmatprep.subr.mxu0 0.0
    %206 = vmatpush1.msra.mxu0 %v152
    %207 = vmatprep.subr.mxu0 0.0
    %208 = vmatpush1.msra.mxu0 %v153
    %209 = vmatprep.subr.mxu0 0.0
    %210 = vmatpush1.msra.mxu0 %v154
    %211 = vmatprep.subr.mxu0 0.0
    %212 = vmatpush1.msra.mxu0 %v155
    %213 = vmatprep.subr.mxu0 0.0
    %214 = vmatpush1.msra.mxu0 %v156
    %215 = vmatprep.subr.mxu0 0.0
    %216 = vmatpush1.msra.mxu0 %v157
    %217 = vmatprep.subr.mxu0 0.0
    %218 = vmatpush1.msra.mxu0 %v158
    %219 = vmatprep.subr.mxu0 0.0
    %220 = vmatpush1.msra.mxu0 %v159
    %221 = vmatprep.subr.mxu0 0.0
    %222 = vmatpush1.msra.mxu0 %v160
    %223 = vmatprep.subr.mxu0 0.0
    %224 = vmatpush1.msra.mxu0 %v161
    %225 = vmatprep.subr.mxu0 0.0
    %226 = vmatpush1.msra.mxu0 %v162
    %227 = vmatprep.subr.mxu0 0.0
    %228 = vmatpush1.msra.mxu0 %v163
    %229 = vmatprep.subr.mxu0 0.0
    %230 = vmatpush1.msra.mxu0 %v164
    %231 = vmatprep.subr.mxu0 0.0
    %232 = vmatpush1.msra.mxu0 %v165
    %233 = vmatprep.subr.mxu0 0.0
    %234 = vmatpush1.msra.mxu0 %v166
    %235 = vmatprep.subr.mxu0 0.0
    %236 = vmatpush1.msra.mxu0 %v167
    %237 = vmatprep.subr.mxu0 0.0
    %238 = vmatpush1.msra.mxu0 %v168
    %239 = vmatprep.subr.mxu0 0.0
    %240 = vmatpush1.msra.mxu0 %v169
    %241 = vmatprep.mubr.f32.mxu0 %v137
    %242 = vmatmul.mubr.f32.gmra.mrb[0].mxu0 %v136
    %v243 = vpop.f32.mrb[0].mxu0
    %v244 = vadd.f32 %v175, %v243
    %v245 = vpop.f32.mrb[0].mxu0
    %246 = vdwg.mxu0
    %vm247 = vcmask 523264
    %248 = vst.msk [vmem:[#allocation2] sm:$0xff] %vm247, %v244
    // Predicated region
    $region22: #{mlp_forward.1} parent=1 // pred_check
      _
    $region23: #{mlp_forward.1} parent=1 // pred_check_branch
      %250 = sbr.rel (0) target = $region25
    $region24: #{mlp_forward.1} parent=1 // pred_region
      // Predicated region
      $region26: #{mlp_forward.1} parent=24 // pred_check
        _
      $region27: #{mlp_forward.1} parent=24 // pred_check_branch
        %252 = sbr.rel (0) target = $region29
      $region28: #{mlp_forward.1} parent=24 // pred_region
        // Predicated region
        $region30: #{mlp_forward.1} parent=28 // pred_check
          _
        $region31: #{mlp_forward.1} parent=28 // pred_check_branch
          %254 = sbr.rel target = $region33
        $region32: #{mlp_forward.1} parent=28 // pred_region
          // Predicated region
          $region45: #{mlp_forward.1} parent=32 // pred_check
            _
          $region46: #{mlp_forward.1} parent=32 // pred_check_branch
            %269 = sbr.rel (0) target = $region48
          $region47: #{mlp_forward.1} parent=32 // pred_region
            loop: start=0, step=1, limit=1
            $region49: #{mlp_forward.1} parent=47 // loop_pre_header
              _
            $region50: #{mlp_forward.1} parent=47 // loop_header
              %s272 = sphi 0, %s276
              %p273 = scmp.ge.s32.totalorder %s272, 1
              %s277 = sphi [#allocation2], [#allocation2]
              %s278 = sphi %s5, %s5
            $region51: #{mlp_forward.1} parent=47 // loop_header_branch
              %275 = sbr.rel (%p273) target = $region55
            $region52: #{mlp_forward.1} parent=47 // loop_body
              %v279 = vld [vmem:[%s277] sm:$0x1]
              %280 = vst [vmem:[%s278] sm:$0x1] %v279
            $region53: #{mlp_forward.1} parent=47 // loop_footer
              %s276 = sadd.s32 1, %s272
            $region54: #{mlp_forward.1} parent=47 // loop_footer_branch
              %271 = sbr.rel target = $region50
            $region55: #{mlp_forward.1} parent=47 // loop_exit
              _
          $region48: #{mlp_forward.1} parent=32 // pred_fallthru
            _
        $region33: #{mlp_forward.1} parent=28 // pred_fallthru
          _
        // Predicated region
        $region34: #{mlp_forward.1} parent=28 // pred_check
          _
        $region35: #{mlp_forward.1} parent=28 // pred_check_branch
          %256 = sbr.rel (0) target = $region37
        $region36: #{mlp_forward.1} parent=28 // pred_region
          loop: start=0, step=1, limit=1
          $region38: #{mlp_forward.1} parent=36 // loop_pre_header
            _
          $region39: #{mlp_forward.1} parent=36 // loop_header
            %s259 = sphi 0, %s263
            %p260 = scmp.ge.s32.totalorder %s259, 1
            %s264 = sphi [#allocation2], [#allocation2]
            %s265 = sphi %s5, %s5
          $region40: #{mlp_forward.1} parent=36 // loop_header_branch
            %262 = sbr.rel (%p260) target = $region44
          $region41: #{mlp_forward.1} parent=36 // loop_body
            %v266 = vld [vmem:[%s264] sm:$0x1]
            %267 = vst [vmem:[%s265] sm:$0x1] %v266
          $region42: #{mlp_forward.1} parent=36 // loop_footer
            %s263 = sadd.s32 1, %s259
          $region43: #{mlp_forward.1} parent=36 // loop_footer_branch
            %258 = sbr.rel target = $region39
          $region44: #{mlp_forward.1} parent=36 // loop_exit
            _
        $region37: #{mlp_forward.1} parent=28 // pred_fallthru
          _
      $region29: #{mlp_forward.1} parent=24 // pred_fallthru
        _
      %281 = vnop
    $region25: #{mlp_forward.1} parent=1 // pred_fallthru
      _
    // Predicated region
    $region56: #{mlp_forward.1} parent=1 // pred_check
      _
    $region57: #{mlp_forward.1} parent=1 // pred_check_branch
      %283 = sbr.rel (0) target = $region59
    $region58: #{mlp_forward.1} parent=1 // pred_region
      _
    $region59: #{mlp_forward.1} parent=1 // pred_fallthru
      _

</llo_original>
